<compile_context>
chip_gen: v7x
topology: tpu7x:2x2x1
jax: 0.10.0
libtpu: 0.0.40
codegen_flags: <defaults>
</compile_context>

<pallas_src>
import functools

import jax
import jax.numpy as jnp
from jax.experimental import pallas as pl
from jax.experimental.pallas import tpu as pltpu

LAMBDA = 7.5          # _lambda in the PyTorch module
EPS = 1e-5            # eps used by the standard AdaIN utils.mean_std

_LANES = 128
_SUBLANES = 8
# v7x has 64 MiB physical VMEM per TC -> keep the request well under ~48 MiB.
# Actual double-buffered usage here is <= ~24 MiB, safe on v5e / v6e / v7x.
_VMEM_LIMIT = 40 * 1024 * 1024


def _round_up(x, m):
    return (x + m - 1) // m * m


def _compiler_params():
    # "parallel" lets v7x shard the grid across its two TensorCores; it is a
    # no-op (but harmless) on single-TC v5e/v6e.
    return pltpu.CompilerParams(
        dimension_semantics=(pltpu.PARALLEL,),
        vmem_limit_bytes=_VMEM_LIMIT)


# ----------------------------- content loss -------------------------------
def _content_sse_kernel(a_ref, b_ref, o_ref, *, block_rows, group_rows,
                        total_rows, need_mask):
    pid = pl.program_id(0)
    base = pid * block_rows
    n_groups = block_rows // group_rows

    def body(g, acc):
        r0 = pl.multiple_of(g * group_rows, group_rows)
        a = a_ref[pl.ds(r0, group_rows), :].astype(jnp.float32)
        b = b_ref[pl.ds(r0, group_rows), :].astype(jnp.float32)
        d = a - b
        if need_mask:
            rid = base + r0 + jax.lax.broadcasted_iota(
                jnp.int32, (group_rows, 1), 0)
            d = jnp.where(rid < total_rows, d, 0.0)   # mask before squaring
        return acc + d * d

    # Explicit streaming accumulation: no block-sized squared-diff temp.
    acc = jax.lax.fori_loop(
        0, n_groups, body, jnp.zeros((group_rows, _LANES), jnp.float32))
    o_ref[...] = jnp.sum(
        acc.reshape(group_rows // _SUBLANES, _SUBLANES, _LANES), axis=0)


def content_loss(vgg_out, adain_out, *, target_block_bytes=4 << 20):
    """F.mse_loss(vgg_out, adain_out): mean of squared diff over all elems."""
    n_elems = vgg_out.size
    total_rows = n_elems // _LANES

    if (n_elems % _LANES) != 0 or total_rows < _SUBLANES:
        # TODO(synk): manual-DMA (pl.ANY) path for non-lane-aligned sizes; the
        # fused XLA reduction below is a single HBM pass (still no pad copy).
        d = (vgg_out.astype(jnp.float32)
             - adain_out.astype(jnp.float32)).reshape(-1)
        return jnp.sum(d * d) / jnp.float32(n_elems)

    # Free, copy-less reshape of the contiguous tensors to a lane-dense slab.
    a = vgg_out.reshape(total_rows, _LANES)
    b = adain_out.reshape(total_rows, _LANES)

    target_rows = max(
        _SUBLANES,
        (target_block_bytes // (_LANES * 4)) // _SUBLANES * _SUBLANES)
    # Cap block so the grid has >= 2 steps whenever possible (v7x 2-TC split).
    half_rows = _round_up(pl.cdiv(total_rows, 2), _SUBLANES)
    block_rows = max(_SUBLANES, min(target_rows, half_rows))
    num_blocks = pl.cdiv(total_rows, block_rows)
    need_mask = (total_rows % block_rows) != 0
    group_rows = 64 if block_rows % 64 == 0 else _SUBLANES

    kernel = functools.partial(
        _content_sse_kernel, block_rows=block_rows, group_rows=group_rows,
        total_rows=total_rows, need_mask=need_mask)

    partials = pl.pallas_call(
        kernel,
        out_shape=jax.ShapeDtypeStruct((num_blocks * _SUBLANES, _LANES),
                                       jnp.float32),
        grid=(num_blocks,),
        in_specs=[
            pl.BlockSpec((block_rows, _LANES), lambda i: (i, 0)),
            pl.BlockSpec((block_rows, _LANES), lambda i: (i, 0)),
        ],
        out_specs=pl.BlockSpec((_SUBLANES, _LANES), lambda i: (i, 0)),
        compiler_params=_compiler_params(),
        cost_estimate=pl.CostEstimate(
            flops=3 * n_elems,
            transcendentals=0,
            bytes_accessed=2 * n_elems * a.dtype.itemsize
            + num_blocks * _SUBLANES * _LANES * 4),
    )(a, b)
    return jnp.sum(partials) / jnp.float32(n_elems)


# ------------------------------ style loss --------------------------------
def _style_rowmajor_kernel(v_ref, s_ref, o_ref, *, tile_rows, hw, valid_rows,
                           need_mask):
    # Layout (N*C rows, H*W cols), H*W >= 128 so rows are lane-dense.
    pid = pl.program_id(0)
    v = v_ref[...].astype(jnp.float32)
    s = s_ref[...].astype(jnp.float32)
    inv_hw = jnp.float32(1.0 / hw)
    inv_hwm1 = jnp.float32(1.0 / (hw - 1)) if hw > 1 else jnp.float32(jnp.inf)

    # Two-pass (mean, then centered sum of squares): avoids the catastrophic
    # cancellation of E[x^2]-E[x]^2 for large-mean post-ReLU VGG features.
    v_mean = jnp.sum(v, axis=1, keepdims=True) * inv_hw
    s_mean = jnp.sum(s, axis=1, keepdims=True) * inv_hw
    vd = v - v_mean
    sd = s - s_mean
    v_std = jnp.sqrt(jnp.sum(vd * vd, axis=1, keepdims=True) * inv_hwm1 + EPS)
    s_std = jnp.sqrt(jnp.sum(sd * sd, axis=1, keepdims=True) * inv_hwm1 + EPS)

    dm = v_mean - s_mean
    ds = v_std - s_std
    contrib = dm * dm + ds * ds                      # (tile_rows, 1)
    if need_mask:
        rid = pid * tile_rows + jax.lax.broadcasted_iota(
            jnp.int32, (tile_rows, 1), 0)
        contrib = jnp.where(rid < valid_rows, contrib, 0.0)
    # Scalar partial, replicated for an unmasked (8, 128) store.
    o_ref[...] = jnp.sum(contrib) + jnp.zeros((_SUBLANES, _LANES), jnp.float32)


def _style_level_rowmajor(v, s, *, target_block_bytes=2 << 20):
    """(sum((dmean)^2 + (dstd)^2), N*C) for one level with H*W >= 128."""
    n, c, h, w = v.shape
    rows, cols = n * c, h * w
    v2 = v.reshape(rows, cols)        # free contiguous reshape, no copy
    s2 = s.reshape(rows, cols)

    if rows <= _SUBLANES:
        tile_rows = rows              # full-dim block (allowed by Mosaic)
    else:
        budget_rows = max(
            _SUBLANES,
            (target_block_bytes // (cols * 4)) // _SUBLANES * _SUBLANES)
        half_rows = _round_up(pl.cdiv(rows, 2), _SUBLANES)
        tile_rows = max(_SUBLANES, min(budget_rows, half_rows))
    num_blocks = pl.cdiv(rows, tile_rows)
    need_mask = (rows % tile_rows) != 0
    # TODO(synk): add a second ("arbitrary") grid axis over cols for very large
    # H*W so an 8-row block never has to hold the whole row in VMEM (v7x).

    kernel = functools.partial(
        _style_rowmajor_kernel, tile_rows=tile_rows, hw=cols,
        valid_rows=rows, need_mask=need_mask)

    partials = pl.pallas_call(
        kernel,
        out_shape=jax.ShapeDtypeStruct((num_blocks * _SUBLANES, _LANES),
                                       jnp.float32),
        grid=(num_blocks,),
        in_specs=[
            pl.BlockSpec((tile_rows, cols), lambda i: (i, 0)),
            pl.BlockSpec((tile_rows, cols), lambda i: (i, 0)),
        ],
        out_specs=pl.BlockSpec((_SUBLANES, _LANES), lambda i: (i, 0)),
        compiler_params=_compiler_params(),
        cost_estimate=pl.CostEstimate(
            flops=7 * rows * cols,
            transcendentals=2 * rows,
            bytes_accessed=2 * rows * cols * v2.dtype.itemsize
            + num_blocks * _SUBLANES * _LANES * 4),
    )(v2, s2)
    per_block = partials.reshape(num_blocks, _SUBLANES, _LANES)[:, 0, 0]
    return jnp.sum(per_block), rows


def _style_lanedense_kernel(v_ref, s_ref, o_ref, *, hw):
    # (H*W, N*C) layout: channels are lane-dense; reductions run over sublanes
    # with plain VPU adds (no masked 128-lane rows, no XLU per-row reduce).
    v = v_ref[...].astype(jnp.float32)
    s = s_ref[...].astype(jnp.float32)
    inv_hw = jnp.float32(1.0 / hw)
    inv_hwm1 = jnp.float32(1.0 / (hw - 1)) if hw > 1 else jnp.float32(jnp.inf)

    v_mean = jnp.sum(v, axis=0, keepdims=True) * inv_hw      # (1, N*C)
    s_mean = jnp.sum(s, axis=0, keepdims=True) * inv_hw
    vd = v - v_mean
    sd = s - s_mean
    v_std = jnp.sqrt(jnp.sum(vd * vd, axis=0, keepdims=True) * inv_hwm1 + EPS)
    s_std = jnp.sqrt(jnp.sum(sd * sd, axis=0, keepdims=True) * inv_hwm1 + EPS)

    dm = v_mean - s_mean
    ds = v_std - s_std
    o_ref[...] = (jnp.sum(dm * dm + ds * ds)
                  + jnp.zeros((_SUBLANES, _LANES), jnp.float32))


def _style_level_lanedense(v, s):
    """Deep levels with H*W < 128: tiny, so repack lane-dense and do one block."""
    n, c, h, w = v.shape
    rows, cols = n * c, h * w
    vt = jnp.transpose(v.reshape(rows, cols))    # (H*W, N*C); tiny copy
    st = jnp.transpose(s.reshape(rows, cols))

    out = pl.pallas_call(
        functools.partial(_style_lanedense_kernel, hw=cols),
        out_shape=jax.ShapeDtypeStruct((_SUBLANES, _LANES), jnp.float32),
        grid=(1,),
        in_specs=[
            pl.BlockSpec((cols, rows), lambda i: (0, 0)),
            pl.BlockSpec((cols, rows), lambda i: (0, 0)),
        ],
        out_specs=pl.BlockSpec((_SUBLANES, _LANES), lambda i: (0, 0)),
        compiler_params=_compiler_params(),
        cost_estimate=pl.CostEstimate(
            flops=7 * rows * cols,
            transcendentals=2 * rows,
            bytes_accessed=2 * rows * cols * vt.dtype.itemsize
            + _SUBLANES * _LANES * 4),
    )(vt, st)
    return out[0, 0], rows


def style_loss(vgg_out_features, style_features):
    """sum over levels of MSE(mean_v, mean_s) + MSE(std_v, std_s)."""
    # TODO(synk): fuse all levels (and optionally the content call) into one
    # pallas_call via PrefetchScalarGridSpec per-block (offset, hw, rows)
    # scalars; kept per-level here because block shapes differ per level.
    total = jnp.float32(0.0)
    for v, s in zip(vgg_out_features, style_features):
        hw = v.shape[2] * v.shape[3]
        if hw < _LANES:
            sse, rows = _style_level_lanedense(v, s)
        else:
            sse, rows = _style_level_rowmajor(v, s)
        # F.mse_loss over (N, C) stats divides by N*C; mean & std MSE share it.
        total = total + sse / jnp.float32(rows)
    return total


# ------------------------------- forward ----------------------------------
def adain_loss(vgg_out, adain_out, vgg_out_features, style_features,
               _lambda=LAMBDA):
    c_loss = content_loss(vgg_out, adain_out)
    s_loss = style_loss(vgg_out_features, style_features)
    return c_loss, jnp.float32(_lambda) * s_loss


# --------------------------- pure-JAX reference ----------------------------
def _mean_std_ref(x):
    n, c = x.shape[:2]
    flat = x.reshape(n, c, -1)
    mean = flat.mean(axis=2)
    var = flat.var(axis=2, ddof=1) + EPS     # torch.var default is unbiased
    return mean, jnp.sqrt(var)


def _adain_loss_ref(vgg_out, adain_out, vgg_feats, style_feats,
                    _lambda=LAMBDA):
    c_loss = jnp.mean((vgg_out - adain_out) ** 2)
    s = 0.0
    for v, st in zip(vgg_feats, style_feats):
        vm, vs = _mean_std_ref(v)
        sm, ss = _mean_std_ref(st)
        s = s + jnp.mean((vm - sm) ** 2) + jnp.mean((vs - ss) ** 2)
    return c_loss, _lambda * s


if __name__ == "__main__":
    key = jax.random.PRNGKey(0)
    k = jax.random.split(key, 8)

    # encoder2 output vs adain output (same shape)
    vgg_out = jax.random.normal(k[0], (2, 4, 16, 16), jnp.float32)
    adain_out = jax.random.normal(k[1], (2, 4, 16, 16), jnp.float32)

    # multi-level VGG-style features from encoder2 / encoder1
    feat_shapes = [(2, 4, 16, 16), (2, 8, 8, 8), (2, 16, 4, 4)]
    vgg_out_features = tuple(
        jax.random.normal(k[2 + i], s, jnp.float32)
        for i, s in enumerate(feat_shapes))
    style_features = tuple(
        jax.random.normal(k[5 + i], s, jnp.float32)
        for i, s in enumerate(feat_shapes))

    fwd = jax.jit(adain_loss)
    c_loss, s_loss = fwd(vgg_out, adain_out, vgg_out_features, style_features)
    jax.block_until_ready((c_loss, s_loss))

    c_ref, s_ref = _adain_loss_ref(vgg_out, adain_out,
                                   vgg_out_features, style_features)
    assert jnp.allclose(c_loss, c_ref, rtol=1e-5, atol=1e-5), (c_loss, c_ref)
    assert jnp.allclose(s_loss, s_ref, rtol=1e-5, atol=1e-5), (s_loss, s_ref)

    print("KERNEL_OK")
</pallas_src>

<mosaic_0001>
module attributes {stable_mosaic.version = 11 : i64} {
  func.func @_style_lanedense_kernel(%arg0: i32, %arg1: memref<64x16xf32, #tpu.memory_space<vmem>>, %arg2: memref<64x16xf32, #tpu.memory_space<vmem>>, %arg3: memref<8x128xf32, #tpu.memory_space<vmem>>) attributes {dimension_semantics = [#tpu.dimension_semantics<parallel>], iteration_bounds = array<i64: 1>, scalar_prefetch = 0 : i64, scratch_operands = 0 : i64, tpu.core_type = #tpu.core_type<tc>, window_params = [{pipeline_mode = #tpu.pipeline_mode<synchronous>, transform_indices = @transform_0, window_bounds = array<i64: 64, 16>}, {pipeline_mode = #tpu.pipeline_mode<synchronous>, transform_indices = @transform_1, window_bounds = array<i64: 64, 16>}, {pipeline_mode = #tpu.pipeline_mode<synchronous>, transform_indices = @transform_2, window_bounds = array<i64: 8, 128>}]} {
    %c0 = arith.constant 0 : index
    %c0_0 = arith.constant 0 : index
    %0 = vector.load %arg1[%c0, %c0_0] : memref<64x16xf32, #tpu.memory_space<vmem>>, vector<64x16xf32>
    %c0_1 = arith.constant 0 : index
    %c0_2 = arith.constant 0 : index
    %1 = vector.load %arg2[%c0_1, %c0_2] : memref<64x16xf32, #tpu.memory_space<vmem>>, vector<64x16xf32>
    %cst = arith.constant dense<0.000000e+00> : vector<16xf32>
    %2 = vector.multi_reduction <add>, %0, %cst [0] : vector<64x16xf32> to vector<16xf32>
    %3 = vector.shape_cast %2 : vector<16xf32> to vector<1x16xf32>
    %cst_3 = arith.constant 1.562500e-02 : f32
    %4 = vector.broadcast %cst_3 : f32 to vector<1x16xf32>
    %5 = arith.mulf %3, %4 : vector<1x16xf32>
    %cst_4 = arith.constant dense<0.000000e+00> : vector<16xf32>
    %6 = vector.multi_reduction <add>, %1, %cst_4 [0] : vector<64x16xf32> to vector<16xf32>
    %7 = vector.shape_cast %6 : vector<16xf32> to vector<1x16xf32>
    %cst_5 = arith.constant 1.562500e-02 : f32
    %8 = vector.broadcast %cst_5 : f32 to vector<1x16xf32>
    %9 = arith.mulf %7, %8 : vector<1x16xf32>
    %10 = vector.broadcast %5 : vector<1x16xf32> to vector<64x16xf32>
    %11 = arith.subf %0, %10 : vector<64x16xf32>
    %12 = vector.broadcast %9 : vector<1x16xf32> to vector<64x16xf32>
    %13 = arith.subf %1, %12 : vector<64x16xf32>
    %14 = arith.mulf %11, %11 : vector<64x16xf32>
    %cst_6 = arith.constant dense<0.000000e+00> : vector<16xf32>
    %15 = vector.multi_reduction <add>, %14, %cst_6 [0] : vector<64x16xf32> to vector<16xf32>
    %16 = vector.shape_cast %15 : vector<16xf32> to vector<1x16xf32>
    %cst_7 = arith.constant 0.0158730168 : f32
    %17 = vector.broadcast %cst_7 : f32 to vector<1x16xf32>
    %18 = arith.mulf %16, %17 : vector<1x16xf32>
    %cst_8 = arith.constant 9.99999974E-6 : f32
    %19 = vector.broadcast %cst_8 : f32 to vector<1x16xf32>
    %20 = arith.addf %18, %19 : vector<1x16xf32>
    %21 = math.sqrt %20 : vector<1x16xf32>
    %22 = arith.mulf %13, %13 : vector<64x16xf32>
    %cst_9 = arith.constant dense<0.000000e+00> : vector<16xf32>
    %23 = vector.multi_reduction <add>, %22, %cst_9 [0] : vector<64x16xf32> to vector<16xf32>
    %24 = vector.shape_cast %23 : vector<16xf32> to vector<1x16xf32>
    %cst_10 = arith.constant 0.0158730168 : f32
    %25 = vector.broadcast %cst_10 : f32 to vector<1x16xf32>
    %26 = arith.mulf %24, %25 : vector<1x16xf32>
    %cst_11 = arith.constant 9.99999974E-6 : f32
    %27 = vector.broadcast %cst_11 : f32 to vector<1x16xf32>
    %28 = arith.addf %26, %27 : vector<1x16xf32>
    %29 = math.sqrt %28 : vector<1x16xf32>
    %30 = arith.subf %5, %9 : vector<1x16xf32>
    %31 = arith.subf %21, %29 : vector<1x16xf32>
    %32 = arith.mulf %30, %30 : vector<1x16xf32>
    %33 = arith.mulf %31, %31 : vector<1x16xf32>
    %34 = arith.addf %32, %33 : vector<1x16xf32>
    %35 = vector.shape_cast %34 : vector<1x16xf32> to vector<1x1x16xf32>
    %cst_12 = arith.constant dense<0.000000e+00> : vector<1xf32>
    %36 = vector.multi_reduction <add>, %35, %cst_12 [1, 2] : vector<1x1x16xf32> to vector<1xf32>
    %37 = vector.shape_cast %36 : vector<1xf32> to vector<1x1x1xf32>
    %38 = vector.extract %37[0, 0, 0] : f32 from vector<1x1x1xf32>
    %cst_13 = arith.constant 0.000000e+00 : f32
    %39 = vector.broadcast %cst_13 : f32 to vector<8x128xf32>
    %40 = vector.broadcast %38 : f32 to vector<8x128xf32>
    %41 = arith.addf %40, %39 : vector<8x128xf32>
    %c0_14 = arith.constant 0 : index
    %c0_15 = arith.constant 0 : index
    %42 = vector.load %arg3[%c0_14, %c0_15] : memref<8x128xf32, #tpu.memory_space<vmem>>, vector<8x128xf32>
    tpu.vector_store %arg3[%c0_14, %c0_15], %41 {strides = array<i32>} : memref<8x128xf32, #tpu.memory_space<vmem>>, vector<8x128xf32>,
    return
  }
  func.func @transform_0(%arg0: i32) -> (i32, i32) {
    %c0_i32 = arith.constant 0 : i32
    %c0_i32_0 = arith.constant 0 : i32
    %c0_i32_1 = arith.constant 0 : i32
    return %c0_i32, %c0_i32_0 : i32, i32
  }
  func.func @transform_1(%arg0: i32) -> (i32, i32) {
    %c0_i32 = arith.constant 0 : i32
    %c0_i32_0 = arith.constant 0 : i32
    %c0_i32_1 = arith.constant 0 : i32
    return %c0_i32, %c0_i32_0 : i32, i32
  }
  func.func @transform_2(%arg0: i32) -> (i32, i32) {
    %c0_i32 = arith.constant 0 : i32
    %c0_i32_0 = arith.constant 0 : i32
    %c0_i32_1 = arith.constant 0 : i32
    return %c0_i32, %c0_i32_0 : i32, i32
  }
}

module attributes {stable_mosaic.version = 11 : i64} {
  func.func @_style_rowmajor_kernel(%arg0: i32, %arg1: memref<8x256xf32, #tpu.memory_space<vmem>>, %arg2: memref<8x256xf32, #tpu.memory_space<vmem>>, %arg3: memref<8x128xf32, #tpu.memory_space<vmem>>) attributes {dimension_semantics = [#tpu.dimension_semantics<parallel>], iteration_bounds = array<i64: 1>, scalar_prefetch = 0 : i64, scratch_operands = 0 : i64, tpu.core_type = #tpu.core_type<tc>, window_params = [{transform_indices = @transform_0, window_bounds = array<i64: 8, 256>}, {transform_indices = @transform_1, window_bounds = array<i64: 8, 256>}, {transform_indices = @transform_2, window_bounds = array<i64: 8, 128>}]} {
    %c0 = arith.constant 0 : index
    %c0_0 = arith.constant 0 : index
    %0 = vector.load %arg1[%c0, %c0_0] : memref<8x256xf32, #tpu.memory_space<vmem>>, vector<8x256xf32>
    %c0_1 = arith.constant 0 : index
    %c0_2 = arith.constant 0 : index
    %1 = vector.load %arg2[%c0_1, %c0_2] : memref<8x256xf32, #tpu.memory_space<vmem>>, vector<8x256xf32>
    %cst = arith.constant dense<0.000000e+00> : vector<8xf32>
    %2 = vector.multi_reduction <add>, %0, %cst [1] : vector<8x256xf32> to vector<8xf32>
    %3 = vector.shape_cast %2 : vector<8xf32> to vector<8x1xf32>
    %cst_3 = arith.constant 3.906250e-03 : f32
    %4 = vector.broadcast %cst_3 : f32 to vector<8x1xf32>
    %5 = arith.mulf %3, %4 : vector<8x1xf32>
    %cst_4 = arith.constant dense<0.000000e+00> : vector<8xf32>
    %6 = vector.multi_reduction <add>, %1, %cst_4 [1] : vector<8x256xf32> to vector<8xf32>
    %7 = vector.shape_cast %6 : vector<8xf32> to vector<8x1xf32>
    %cst_5 = arith.constant 3.906250e-03 : f32
    %8 = vector.broadcast %cst_5 : f32 to vector<8x1xf32>
    %9 = arith.mulf %7, %8 : vector<8x1xf32>
    %10 = vector.broadcast %5 : vector<8x1xf32> to vector<8x256xf32>
    %11 = arith.subf %0, %10 : vector<8x256xf32>
    %12 = vector.broadcast %9 : vector<8x1xf32> to vector<8x256xf32>
    %13 = arith.subf %1, %12 : vector<8x256xf32>
    %14 = arith.mulf %11, %11 : vector<8x256xf32>
    %cst_6 = arith.constant dense<0.000000e+00> : vector<8xf32>
    %15 = vector.multi_reduction <add>, %14, %cst_6 [1] : vector<8x256xf32> to vector<8xf32>
    %16 = vector.shape_cast %15 : vector<8xf32> to vector<8x1xf32>
    %cst_7 = arith.constant 0.00392156886 : f32
    %17 = vector.broadcast %cst_7 : f32 to vector<8x1xf32>
    %18 = arith.mulf %16, %17 : vector<8x1xf32>
    %cst_8 = arith.constant 9.99999974E-6 : f32
    %19 = vector.broadcast %cst_8 : f32 to vector<8x1xf32>
    %20 = arith.addf %18, %19 : vector<8x1xf32>
    %21 = math.sqrt %20 : vector<8x1xf32>
    %22 = arith.mulf %13, %13 : vector<8x256xf32>
    %cst_9 = arith.constant dense<0.000000e+00> : vector<8xf32>
    %23 = vector.multi_reduction <add>, %22, %cst_9 [1] : vector<8x256xf32> to vector<8xf32>
    %24 = vector.shape_cast %23 : vector<8xf32> to vector<8x1xf32>
    %cst_10 = arith.constant 0.00392156886 : f32
    %25 = vector.broadcast %cst_10 : f32 to vector<8x1xf32>
    %26 = arith.mulf %24, %25 : vector<8x1xf32>
    %cst_11 = arith.constant 9.99999974E-6 : f32
    %27 = vector.broadcast %cst_11 : f32 to vector<8x1xf32>
    %28 = arith.addf %26, %27 : vector<8x1xf32>
    %29 = math.sqrt %28 : vector<8x1xf32>
    %30 = arith.subf %5, %9 : vector<8x1xf32>
    %31 = arith.subf %21, %29 : vector<8x1xf32>
    %32 = arith.mulf %30, %30 : vector<8x1xf32>
    %33 = arith.mulf %31, %31 : vector<8x1xf32>
    %34 = arith.addf %32, %33 : vector<8x1xf32>
    %35 = vector.shape_cast %34 : vector<8x1xf32> to vector<1x8x1xf32>
    %cst_12 = arith.constant dense<0.000000e+00> : vector<1xf32>
    %36 = vector.multi_reduction <add>, %35, %cst_12 [1, 2] : vector<1x8x1xf32> to vector<1xf32>
    %37 = vector.shape_cast %36 : vector<1xf32> to vector<1x1x1xf32>
    %38 = vector.extract %37[0, 0, 0] : f32 from vector<1x1x1xf32>
    %cst_13 = arith.constant 0.000000e+00 : f32
    %39 = vector.broadcast %cst_13 : f32 to vector<8x128xf32>
    %40 = vector.broadcast %38 : f32 to vector<8x128xf32>
    %41 = arith.addf %40, %39 : vector<8x128xf32>
    %c0_14 = arith.constant 0 : index
    %c0_15 = arith.constant 0 : index
    %42 = vector.load %arg3[%c0_14, %c0_15] : memref<8x128xf32, #tpu.memory_space<vmem>>, vector<8x128xf32>
    tpu.vector_store %arg3[%c0_14, %c0_15], %41 {strides = array<i32>} : memref<8x128xf32, #tpu.memory_space<vmem>>, vector<8x128xf32>,
    return
  }
  func.func @transform_0(%arg0: i32) -> (i32, i32) {
    %c0_i32 = arith.constant 0 : i32
    %c0_i32_0 = arith.constant 0 : i32
    return %arg0, %c0_i32 : i32, i32
  }
  func.func @transform_1(%arg0: i32) -> (i32, i32) {
    %c0_i32 = arith.constant 0 : i32
    %c0_i32_0 = arith.constant 0 : i32
    return %arg0, %c0_i32 : i32, i32
  }
  func.func @transform_2(%arg0: i32) -> (i32, i32) {
    %c0_i32 = arith.constant 0 : i32
    %c0_i32_0 = arith.constant 0 : i32
    return %arg0, %c0_i32 : i32, i32
  }
}

module attributes {stable_mosaic.version = 11 : i64} {
  func.func @_style_lanedense_kernel(%arg0: i32, %arg1: memref<16x32xf32, #tpu.memory_space<vmem>>, %arg2: memref<16x32xf32, #tpu.memory_space<vmem>>, %arg3: memref<8x128xf32, #tpu.memory_space<vmem>>) attributes {dimension_semantics = [#tpu.dimension_semantics<parallel>], iteration_bounds = array<i64: 1>, scalar_prefetch = 0 : i64, scratch_operands = 0 : i64, tpu.core_type = #tpu.core_type<tc>, window_params = [{pipeline_mode = #tpu.pipeline_mode<synchronous>, transform_indices = @transform_0, window_bounds = array<i64: 16, 32>}, {pipeline_mode = #tpu.pipeline_mode<synchronous>, transform_indices = @transform_1, window_bounds = array<i64: 16, 32>}, {pipeline_mode = #tpu.pipeline_mode<synchronous>, transform_indices = @transform_2, window_bounds = array<i64: 8, 128>}]} {
    %c0 = arith.constant 0 : index
    %c0_0 = arith.constant 0 : index
    %0 = vector.load %arg1[%c0, %c0_0] : memref<16x32xf32, #tpu.memory_space<vmem>>, vector<16x32xf32>
    %c0_1 = arith.constant 0 : index
    %c0_2 = arith.constant 0 : index
    %1 = vector.load %arg2[%c0_1, %c0_2] : memref<16x32xf32, #tpu.memory_space<vmem>>, vector<16x32xf32>
    %cst = arith.constant dense<0.000000e+00> : vector<32xf32>
    %2 = vector.multi_reduction <add>, %0, %cst [0] : vector<16x32xf32> to vector<32xf32>
    %3 = vector.shape_cast %2 : vector<32xf32> to vector<1x32xf32>
    %cst_3 = arith.constant 6.250000e-02 : f32
    %4 = vector.broadcast %cst_3 : f32 to vector<1x32xf32>
    %5 = arith.mulf %3, %4 : vector<1x32xf32>
    %cst_4 = arith.constant dense<0.000000e+00> : vector<32xf32>
    %6 = vector.multi_reduction <add>, %1, %cst_4 [0] : vector<16x32xf32> to vector<32xf32>
    %7 = vector.shape_cast %6 : vector<32xf32> to vector<1x32xf32>
    %cst_5 = arith.constant 6.250000e-02 : f32
    %8 = vector.broadcast %cst_5 : f32 to vector<1x32xf32>
    %9 = arith.mulf %7, %8 : vector<1x32xf32>
    %10 = vector.broadcast %5 : vector<1x32xf32> to vector<16x32xf32>
    %11 = arith.subf %0, %10 : vector<16x32xf32>
    %12 = vector.broadcast %9 : vector<1x32xf32> to vector<16x32xf32>
    %13 = arith.subf %1, %12 : vector<16x32xf32>
    %14 = arith.mulf %11, %11 : vector<16x32xf32>
    %cst_6 = arith.constant dense<0.000000e+00> : vector<32xf32>
    %15 = vector.multi_reduction <add>, %14, %cst_6 [0] : vector<16x32xf32> to vector<32xf32>
    %16 = vector.shape_cast %15 : vector<32xf32> to vector<1x32xf32>
    %cst_7 = arith.constant 0.0666666701 : f32
    %17 = vector.broadcast %cst_7 : f32 to vector<1x32xf32>
    %18 = arith.mulf %16, %17 : vector<1x32xf32>
    %cst_8 = arith.constant 9.99999974E-6 : f32
    %19 = vector.broadcast %cst_8 : f32 to vector<1x32xf32>
    %20 = arith.addf %18, %19 : vector<1x32xf32>
    %21 = math.sqrt %20 : vector<1x32xf32>
    %22 = arith.mulf %13, %13 : vector<16x32xf32>
    %cst_9 = arith.constant dense<0.000000e+00> : vector<32xf32>
    %23 = vector.multi_reduction <add>, %22, %cst_9 [0] : vector<16x32xf32> to vector<32xf32>
    %24 = vector.shape_cast %23 : vector<32xf32> to vector<1x32xf32>
    %cst_10 = arith.constant 0.0666666701 : f32
    %25 = vector.broadcast %cst_10 : f32 to vector<1x32xf32>
    %26 = arith.mulf %24, %25 : vector<1x32xf32>
    %cst_11 = arith.constant 9.99999974E-6 : f32
    %27 = vector.broadcast %cst_11 : f32 to vector<1x32xf32>
    %28 = arith.addf %26, %27 : vector<1x32xf32>
    %29 = math.sqrt %28 : vector<1x32xf32>
    %30 = arith.subf %5, %9 : vector<1x32xf32>
    %31 = arith.subf %21, %29 : vector<1x32xf32>
    %32 = arith.mulf %30, %30 : vector<1x32xf32>
    %33 = arith.mulf %31, %31 : vector<1x32xf32>
    %34 = arith.addf %32, %33 : vector<1x32xf32>
    %35 = vector.shape_cast %34 : vector<1x32xf32> to vector<1x1x32xf32>
    %cst_12 = arith.constant dense<0.000000e+00> : vector<1xf32>
    %36 = vector.multi_reduction <add>, %35, %cst_12 [1, 2] : vector<1x1x32xf32> to vector<1xf32>
    %37 = vector.shape_cast %36 : vector<1xf32> to vector<1x1x1xf32>
    %38 = vector.extract %37[0, 0, 0] : f32 from vector<1x1x1xf32>
    %cst_13 = arith.constant 0.000000e+00 : f32
    %39 = vector.broadcast %cst_13 : f32 to vector<8x128xf32>
    %40 = vector.broadcast %38 : f32 to vector<8x128xf32>
    %41 = arith.addf %40, %39 : vector<8x128xf32>
    %c0_14 = arith.constant 0 : index
    %c0_15 = arith.constant 0 : index
    %42 = vector.load %arg3[%c0_14, %c0_15] : memref<8x128xf32, #tpu.memory_space<vmem>>, vector<8x128xf32>
    tpu.vector_store %arg3[%c0_14, %c0_15], %41 {strides = array<i32>} : memref<8x128xf32, #tpu.memory_space<vmem>>, vector<8x128xf32>,
    return
  }
  func.func @transform_0(%arg0: i32) -> (i32, i32) {
    %c0_i32 = arith.constant 0 : i32
    %c0_i32_0 = arith.constant 0 : i32
    %c0_i32_1 = arith.constant 0 : i32
    return %c0_i32, %c0_i32_0 : i32, i32
  }
  func.func @transform_1(%arg0: i32) -> (i32, i32) {
    %c0_i32 = arith.constant 0 : i32
    %c0_i32_0 = arith.constant 0 : i32
    %c0_i32_1 = arith.constant 0 : i32
    return %c0_i32, %c0_i32_0 : i32, i32
  }
  func.func @transform_2(%arg0: i32) -> (i32, i32) {
    %c0_i32 = arith.constant 0 : i32
    %c0_i32_0 = arith.constant 0 : i32
    %c0_i32_1 = arith.constant 0 : i32
    return %c0_i32, %c0_i32_0 : i32, i32
  }
}

module attributes {stable_mosaic.version = 11 : i64} {
  func.func @_content_sse_kernel(%arg0: i32, %arg1: memref<8x128xf32, #tpu.memory_space<vmem>>, %arg2: memref<8x128xf32, #tpu.memory_space<vmem>>, %arg3: memref<8x128xf32, #tpu.memory_space<vmem>>) attributes {dimension_semantics = [#tpu.dimension_semantics<parallel>], iteration_bounds = array<i64: 2>, scalar_prefetch = 0 : i64, scratch_operands = 0 : i64, tpu.core_type = #tpu.core_type<tc>, window_params = [{transform_indices = @transform_0, window_bounds = array<i64: 8, 128>}, {transform_indices = @transform_1, window_bounds = array<i64: 8, 128>}, {transform_indices = @transform_2, window_bounds = array<i64: 8, 128>}]} {
    %cst = arith.constant 0.000000e+00 : f32
    %0 = vector.broadcast %cst : f32 to vector<8x128xf32>
    %c0_i32 = arith.constant 0 : i32
    %c8_i32 = arith.constant 8 : i32
    %1 = arith.muli %c0_i32, %c8_i32 : i32
    %2 = tpu.assume_multiple %1, 8 : i32
    %3 = arith.index_cast %2 : i32 to index
    %c0 = arith.constant 0 : index
    %4 = vector.load %arg1[%3, %c0] : memref<8x128xf32, #tpu.memory_space<vmem>>, vector<8x128xf32>
    %5 = arith.index_cast %2 : i32 to index
    %c0_0 = arith.constant 0 : index
    %6 = vector.load %arg2[%5, %c0_0] : memref<8x128xf32, #tpu.memory_space<vmem>>, vector<8x128xf32>
    %7 = arith.subf %4, %6 : vector<8x128xf32>
    %8 = arith.mulf %7, %7 : vector<8x128xf32>
    %9 = arith.addf %0, %8 : vector<8x128xf32>
    %c1_i32 = arith.constant 1 : i32
    %10 = vector.shape_cast %9 : vector<8x128xf32> to vector<1x8x128xf32>
    %cst_1 = arith.constant dense<0.000000e+00> : vector<8x128xf32>
    %11 = vector.multi_reduction <add>, %10, %cst_1 [0] : vector<1x8x128xf32> to vector<8x128xf32>
    %c0_2 = arith.constant 0 : index
    %c0_3 = arith.constant 0 : index
    %12 = vector.load %arg3[%c0_2, %c0_3] : memref<8x128xf32, #tpu.memory_space<vmem>>, vector<8x128xf32>
    tpu.vector_store %arg3[%c0_2, %c0_3], %11 {strides = array<i32>} : memref<8x128xf32, #tpu.memory_space<vmem>>, vector<8x128xf32>,
    return
  }
  func.func @transform_0(%arg0: i32) -> (i32, i32) {
    %c0_i32 = arith.constant 0 : i32
    %c0_i32_0 = arith.constant 0 : i32
    return %arg0, %c0_i32 : i32, i32
  }
  func.func @transform_1(%arg0: i32) -> (i32, i32) {
    %c0_i32 = arith.constant 0 : i32
    %c0_i32_0 = arith.constant 0 : i32
    return %arg0, %c0_i32 : i32, i32
  }
  func.func @transform_2(%arg0: i32) -> (i32, i32) {
    %c0_i32 = arith.constant 0 : i32
    %c0_i32_0 = arith.constant 0 : i32
    return %arg0, %c0_i32 : i32, i32
  }
}

</mosaic_0001>

<llo_original>
// kernel: adain_loss.6
$region0: #{adain_loss.6}
  #allocation0 [shape = 'u32[]', space=smem, size = 0x4, offset = 0x4, fixed_abs, tag = 'smem constant byte address 0x4 - core index']
  #allocation1 [shape = 'u32[144,128]{1,0:T(1,128)}', space=vmem, size = 0x12000, scoped, tag = 'internal scratch']
  %s0 = inlined_call_operand.vmem [shape: f32[64,16], index: 0, kind: input, shape index: {}]
  %s1 = inlined_call_operand.vmem [shape: f32[64,16], index: 1, kind: input, shape index: {}]
  %s2 = inlined_call_operand.vmem [shape: f32[8,128], index: 2, kind: output, shape index: {}]
  %s3 = sld [smem:[#allocation0]]
  $region18: #{adain_loss.6} parent=0
    _
  %s5 = ssub.s32 1, %s3
  %s6 = scalar_select 0, %s5, %s3
  // Predicated region
  $region2: #{adain_loss.6} parent=0 // pred_check
    _
  $region3: #{adain_loss.6} parent=0 // pred_check_branch
    %8 = sbr.rel (0) target = $region5
  $region4: #{adain_loss.6} parent=0 // pred_region
    _
  $region5: #{adain_loss.6} parent=0 // pred_fallthru
    _
  // Predicated region
  $region6: #{adain_loss.6} parent=0 // pred_check
    _
  $region7: #{adain_loss.6} parent=0 // pred_check_branch
    %10 = sbr.rel (0) target = $region9
  $region8: #{adain_loss.6} parent=0 // pred_region
    _
  $region9: #{adain_loss.6} parent=0 // pred_fallthru
    _
  %v11 = vld [vmem:[%s0] sm:$0xff]
  %v12 = vld [vmem:[%s0 + $0x8] sm:$0xff]
  %v13 = vld [vmem:[%s0 + $0x10] sm:$0xff]
  %v14 = vld [vmem:[%s0 + $0x18] sm:$0xff]
  %v15 = vld [vmem:[%s0 + $0x20] sm:$0xff]
  %v16 = vld [vmem:[%s0 + $0x28] sm:$0xff]
  %v17 = vld [vmem:[%s0 + $0x30] sm:$0xff]
  %v18 = vld [vmem:[%s0 + $0x38] sm:$0xff]
  %v19 = vld [vmem:[%s1] sm:$0xff]
  %v20 = vld [vmem:[%s1 + $0x8] sm:$0xff]
  %v21 = vld [vmem:[%s1 + $0x10] sm:$0xff]
  %v22 = vld [vmem:[%s1 + $0x18] sm:$0xff]
  %v23 = vld [vmem:[%s1 + $0x20] sm:$0xff]
  %v24 = vld [vmem:[%s1 + $0x28] sm:$0xff]
  %v25 = vld [vmem:[%s1 + $0x30] sm:$0xff]
  %v26 = vld [vmem:[%s1 + $0x38] sm:$0xff]
  %vm27 = vcmask 130048
  %v28 = vsel %vm27, %v11, 0.0
  %v29 = vsel %vm27, %v12, 0.0
  %v30 = vadd.f32 %v28, %v29
  %v31 = vsel %vm27, %v13, 0.0
  %v32 = vadd.f32 %v30, %v31
  %v33 = vsel %vm27, %v14, 0.0
  %v34 = vadd.f32 %v32, %v33
  %v35 = vsel %vm27, %v15, 0.0
  %v36 = vadd.f32 %v34, %v35
  %v37 = vsel %vm27, %v16, 0.0
  %v38 = vadd.f32 %v36, %v37
  %v39 = vsel %vm27, %v17, 0.0
  %v40 = vadd.f32 %v38, %v39
  %v41 = vsel %vm27, %v18, 0.0
  %v42 = vadd.f32 %v40, %v41
  %v43 = vrot.slane %v42, 4
  %v44 = vadd.f32 %v42, %v43
  %v45 = vrot.slane %v44, 2
  %v46 = vadd.f32 %v44, %v45
  %v47 = vrot.slane %v46, 1
  %v48 = vadd.f32 %v46, %v47
  %v49 = vmul.f32 %v48, 0.015625
  %v50 = vsel %vm27, %v19, 0.0
  %v51 = vsel %vm27, %v20, 0.0
  %v52 = vadd.f32 %v50, %v51
  %v53 = vsel %vm27, %v21, 0.0
  %v54 = vadd.f32 %v52, %v53
  %v55 = vsel %vm27, %v22, 0.0
  %v56 = vadd.f32 %v54, %v55
  %v57 = vsel %vm27, %v23, 0.0
  %v58 = vadd.f32 %v56, %v57
  %v59 = vsel %vm27, %v24, 0.0
  %v60 = vadd.f32 %v58, %v59
  %v61 = vsel %vm27, %v25, 0.0
  %v62 = vadd.f32 %v60, %v61
  %v63 = vsel %vm27, %v26, 0.0
  %v64 = vadd.f32 %v62, %v63
  %v65 = vrot.slane %v64, 4
  %v66 = vadd.f32 %v64, %v65
  %v67 = vrot.slane %v66, 2
  %v68 = vadd.f32 %v66, %v67
  %v69 = vrot.slane %v68, 1
  %v70 = vadd.f32 %v68, %v69
  %v71 = vmul.f32 %v70, 0.015625
  %v72 = vsub.f32 %v11, %v49
  %v73 = vsub.f32 %v12, %v49
  %v74 = vsub.f32 %v13, %v49
  %v75 = vsub.f32 %v14, %v49
  %v76 = vsub.f32 %v15, %v49
  %v77 = vsub.f32 %v16, %v49
  %v78 = vsub.f32 %v17, %v49
  %v79 = vsub.f32 %v18, %v49
  %v80 = vsub.f32 %v19, %v71
  %v81 = vsub.f32 %v20, %v71
  %v82 = vsub.f32 %v21, %v71
  %v83 = vsub.f32 %v22, %v71
  %v84 = vsub.f32 %v23, %v71
  %v85 = vsub.f32 %v24, %v71
  %v86 = vsub.f32 %v25, %v71
  %v87 = vsub.f32 %v26, %v71
  %v88 = vmul.f32 %v72, %v72
  %v89 = vmul.f32 %v73, %v73
  %v90 = vmul.f32 %v74, %v74
  %v91 = vmul.f32 %v75, %v75
  %v92 = vmul.f32 %v76, %v76
  %v93 = vmul.f32 %v77, %v77
  %v94 = vmul.f32 %v78, %v78
  %v95 = vmul.f32 %v79, %v79
  %v96 = vsel %vm27, %v88, 0.0
  %v97 = vsel %vm27, %v89, 0.0
  %v98 = vadd.f32 %v96, %v97
  %v99 = vsel %vm27, %v90, 0.0
  %v100 = vadd.f32 %v98, %v99
  %v101 = vsel %vm27, %v91, 0.0
  %v102 = vadd.f32 %v100, %v101
  %v103 = vsel %vm27, %v92, 0.0
  %v104 = vadd.f32 %v102, %v103
  %v105 = vsel %vm27, %v93, 0.0
  %v106 = vadd.f32 %v104, %v105
  %v107 = vsel %vm27, %v94, 0.0
  %v108 = vadd.f32 %v106, %v107
  %v109 = vsel %vm27, %v95, 0.0
  %v110 = vadd.f32 %v108, %v109
  %v111 = vrot.slane %v110, 4
  %v112 = vadd.f32 %v110, %v111
  %v113 = vrot.slane %v112, 2
  %v114 = vadd.f32 %v112, %v113
  %v115 = vrot.slane %v114, 1
  %v116 = vadd.f32 %v114, %v115
  %v117 = vmul.f32 %v116, 0.015873017
  %v118 = vadd.f32 %v117, 1e-05
  %v119 = vrsqrt.pop %v118
  %v120 = vmul.f32 %v118, %v119
  %vm121 = vcmp.eq.f32.partialorder %v118, inf
  %v122 = vsel %vm121, %v118, %v120
  %vm123 = vcmp.eq.f32.partialorder %v118, 0.0
  %v124 = vand.u32 %v118, 2147483648
  %v125 = vsel %vm123, %v124, %v122
  %v126 = vmul.f32 %v80, %v80
  %v127 = vmul.f32 %v81, %v81
  %v128 = vmul.f32 %v82, %v82
  %v129 = vmul.f32 %v83, %v83
  %v130 = vmul.f32 %v84, %v84
  %v131 = vmul.f32 %v85, %v85
  %v132 = vmul.f32 %v86, %v86
  %v133 = vmul.f32 %v87, %v87
  %v134 = vsel %vm27, %v126, 0.0
  %v135 = vsel %vm27, %v127, 0.0
  %v136 = vadd.f32 %v134, %v135
  %v137 = vsel %vm27, %v128, 0.0
  %v138 = vadd.f32 %v136, %v137
  %v139 = vsel %vm27, %v129, 0.0
  %v140 = vadd.f32 %v138, %v139
  %v141 = vsel %vm27, %v130, 0.0
  %v142 = vadd.f32 %v140, %v141
  %v143 = vsel %vm27, %v131, 0.0
  %v144 = vadd.f32 %v142, %v143
  %v145 = vsel %vm27, %v132, 0.0
  %v146 = vadd.f32 %v144, %v145
  %v147 = vsel %vm27, %v133, 0.0
  %v148 = vadd.f32 %v146, %v147
  %v149 = vrot.slane %v148, 4
  %v150 = vadd.f32 %v148, %v149
  %v151 = vrot.slane %v150, 2
  %v152 = vadd.f32 %v150, %v151
  %v153 = vrot.slane %v152, 1
  %v154 = vadd.f32 %v152, %v153
  %v155 = vmul.f32 %v154, 0.015873017
  %v156 = vadd.f32 %v155, 1e-05
  %v157 = vrsqrt.pop %v156
  %v158 = vmul.f32 %v156, %v157
  %vm159 = vcmp.eq.f32.partialorder %v156, inf
  %v160 = vsel %vm159, %v156, %v158
  %vm161 = vcmp.eq.f32.partialorder %v156, 0.0
  %v162 = vand.u32 %v156, 2147483648
  %v163 = vsel %vm161, %v162, %v160
  %v164 = vsub.f32 %v49, %v71
  %v165 = vsub.f32 %v125, %v163
  %v166 = vmul.f32 %v164, %v164
  %v167 = vmul.f32 %v165, %v165
  %v168 = vadd.f32 %v166, %v167
  %vm169 = vcmask 122880
  %v170 = vsel %vm169, %v168, 0.0
  %171 = vadd.xlane.f32.xlu0 %v170
  %v172 = vpop.xlane.xlu0 %171
  %v173 = vrot.slane %v172, 4
  %v174 = vadd.f32 %v172, %v173
  %v175 = vrot.slane %v174, 2
  %v176 = vadd.f32 %v174, %v175
  %v177 = vrot.slane %v176, 1
  %v178 = vadd.f32 %v176, %v177
  %s179 = vtos %v178
  %v180 = vstv %s179
  %v181 = vadd.f32 %v180, 0.0
  %182 = vst [vmem:[%s2] sm:$0xff] %v181
  // Predicated region
  $region10: #{adain_loss.6} parent=0 // pred_check
    _
  $region11: #{adain_loss.6} parent=0 // pred_check_branch
    %184 = sbr.rel (0) target = $region13
  $region12: #{adain_loss.6} parent=0 // pred_region
    _
  $region13: #{adain_loss.6} parent=0 // pred_fallthru
    _
  // Predicated region
  $region14: #{adain_loss.6} parent=0 // pred_check
    _
  $region15: #{adain_loss.6} parent=0 // pred_check_branch
    %186 = sbr.rel (0) target = $region17
  $region16: #{adain_loss.6} parent=0 // pred_region
    _
  $region17: #{adain_loss.6} parent=0 // pred_fallthru
    _

// kernel: adain_loss.5
$region0: #{adain_loss.5}
  #allocation0 [shape = 'u32[]', space=smem, size = 0x4, offset = 0x4, fixed_abs, tag = 'smem constant byte address 0x4 - core index']
  #allocation1 [shape = 'u32[144,128]{1,0:T(1,128)}', space=vmem, size = 0x12000, scoped, tag = 'internal scratch']
  %s0 = inlined_call_operand.vmem [shape: f32[8,256], index: 0, kind: input, shape index: {}]
  %s1 = inlined_call_operand.vmem [shape: f32[8,256], index: 1, kind: input, shape index: {}]
  %s2 = inlined_call_operand.vmem [shape: f32[8,128], index: 2, kind: output, shape index: {}]
  %s3 = sld [smem:[#allocation0]]
  $region18: #{adain_loss.5} parent=0
    _
  %s5 = ssub.s32 1, %s3
  %s6 = scalar_select 0, %s5, %s3
  // Predicated region
  $region2: #{adain_loss.5} parent=0 // pred_check
    _
  $region3: #{adain_loss.5} parent=0 // pred_check_branch
    %8 = sbr.rel (0) target = $region5
  $region4: #{adain_loss.5} parent=0 // pred_region
    _
  $region5: #{adain_loss.5} parent=0 // pred_fallthru
    _
  // Predicated region
  $region6: #{adain_loss.5} parent=0 // pred_check
    _
  $region7: #{adain_loss.5} parent=0 // pred_check_branch
    %10 = sbr.rel (0) target = $region9
  $region8: #{adain_loss.5} parent=0 // pred_region
    _
  $region9: #{adain_loss.5} parent=0 // pred_fallthru
    _
  %v11 = vld [vmem:[%s0] sm:$0xff]
  %v12 = vld [vmem:[%s0 + $0x8] sm:$0xff]
  %v13 = vld [vmem:[%s1] sm:$0xff]
  %v14 = vld [vmem:[%s1 + $0x8] sm:$0xff]
  %v15 = vadd.f32 %v11, %v12
  %16 = vadd.xlane.f32.xlu0 %v15
  %v17 = vpop.xlane.xlu0 %16
  %v18 = vmul.f32 %v17, 0.00390625
  %v19 = vadd.f32 %v13, %v14
  %20 = vadd.xlane.f32.xlu0 %v19
  %v21 = vpop.xlane.xlu0 %20
  %v22 = vmul.f32 %v21, 0.00390625
  %v23 = vsub.f32 %v11, %v18
  %v24 = vsub.f32 %v12, %v18
  %v25 = vsub.f32 %v13, %v22
  %v26 = vsub.f32 %v14, %v22
  %v27 = vmul.f32 %v23, %v23
  %v28 = vmul.f32 %v24, %v24
  %v29 = vadd.f32 %v27, %v28
  %30 = vadd.xlane.f32.xlu0 %v29
  %v31 = vpop.xlane.xlu0 %30
  %v32 = vmul.f32 %v31, 0.003921569
  %v33 = vadd.f32 %v32, 1e-05
  %v34 = vrsqrt.pop %v33
  %v35 = vmul.f32 %v33, %v34
  %vm36 = vcmp.eq.f32.partialorder %v33, inf
  %v37 = vsel %vm36, %v33, %v35
  %vm38 = vcmp.eq.f32.partialorder %v33, 0.0
  %v39 = vand.u32 %v33, 2147483648
  %v40 = vsel %vm38, %v39, %v37
  %v41 = vmul.f32 %v25, %v25
  %v42 = vmul.f32 %v26, %v26
  %v43 = vadd.f32 %v41, %v42
  %44 = vadd.xlane.f32.xlu0 %v43
  %v45 = vpop.xlane.xlu0 %44
  %v46 = vmul.f32 %v45, 0.003921569
  %v47 = vadd.f32 %v46, 1e-05
  %v48 = vrsqrt.pop %v47
  %v49 = vmul.f32 %v47, %v48
  %vm50 = vcmp.eq.f32.partialorder %v47, inf
  %v51 = vsel %vm50, %v47, %v49
  %vm52 = vcmp.eq.f32.partialorder %v47, 0.0
  %v53 = vand.u32 %v47, 2147483648
  %v54 = vsel %vm52, %v53, %v51
  %v55 = vsub.f32 %v18, %v22
  %v56 = vsub.f32 %v40, %v54
  %v57 = vmul.f32 %v55, %v55
  %v58 = vmul.f32 %v56, %v56
  %v59 = vadd.f32 %v57, %v58
  %vm60 = vcmask 7168
  %v61 = vsel %vm60, %v59, 0.0
  %62 = vadd.xlane.f32.xlu0 %v61
  %v63 = vpop.xlane.xlu0 %62
  %v64 = vrot.slane %v63, 4
  %v65 = vadd.f32 %v63, %v64
  %v66 = vrot.slane %v65, 2
  %v67 = vadd.f32 %v65, %v66
  %v68 = vrot.slane %v67, 1
  %v69 = vadd.f32 %v67, %v68
  %s70 = vtos %v69
  %v71 = vstv %s70
  %v72 = vadd.f32 %v71, 0.0
  %73 = vst [vmem:[%s2] sm:$0xff] %v72
  // Predicated region
  $region10: #{adain_loss.5} parent=0 // pred_check
    _
  $region11: #{adain_loss.5} parent=0 // pred_check_branch
    %75 = sbr.rel (0) target = $region13
  $region12: #{adain_loss.5} parent=0 // pred_region
    _
  $region13: #{adain_loss.5} parent=0 // pred_fallthru
    _
  // Predicated region
  $region14: #{adain_loss.5} parent=0 // pred_check
    _
  $region15: #{adain_loss.5} parent=0 // pred_check_branch
    %77 = sbr.rel (0) target = $region17
  $region16: #{adain_loss.5} parent=0 // pred_region
    _
  $region17: #{adain_loss.5} parent=0 // pred_fallthru
    _

// kernel: adain_loss.7
$region0: #{adain_loss.7}
  #allocation0 [shape = 'u32[]', space=smem, size = 0x4, offset = 0x4, fixed_abs, tag = 'smem constant byte address 0x4 - core index']
  #allocation1 [shape = 'u32[144,128]{1,0:T(1,128)}', space=vmem, size = 0x12000, scoped, tag = 'internal scratch']
  %s0 = inlined_call_operand.vmem [shape: f32[16,32], index: 0, kind: input, shape index: {}]
  %s1 = inlined_call_operand.vmem [shape: f32[16,32], index: 1, kind: input, shape index: {}]
  %s2 = inlined_call_operand.vmem [shape: f32[8,128], index: 2, kind: output, shape index: {}]
  %s3 = sld [smem:[#allocation0]]
  $region18: #{adain_loss.7} parent=0
    _
  %s5 = ssub.s32 1, %s3
  %s6 = scalar_select 0, %s5, %s3
  // Predicated region
  $region2: #{adain_loss.7} parent=0 // pred_check
    _
  $region3: #{adain_loss.7} parent=0 // pred_check_branch
    %8 = sbr.rel (0) target = $region5
  $region4: #{adain_loss.7} parent=0 // pred_region
    _
  $region5: #{adain_loss.7} parent=0 // pred_fallthru
    _
  // Predicated region
  $region6: #{adain_loss.7} parent=0 // pred_check
    _
  $region7: #{adain_loss.7} parent=0 // pred_check_branch
    %10 = sbr.rel (0) target = $region9
  $region8: #{adain_loss.7} parent=0 // pred_region
    _
  $region9: #{adain_loss.7} parent=0 // pred_fallthru
    _
  %v11 = vld [vmem:[%s0] sm:$0xff]
  %v12 = vld [vmem:[%s0 + $0x8] sm:$0xff]
  %v13 = vld [vmem:[%s1] sm:$0xff]
  %v14 = vld [vmem:[%s1 + $0x8] sm:$0xff]
  %vm15 = vcmask 261120
  %v16 = vsel %vm15, %v11, 0.0
  %v17 = vsel %vm15, %v12, 0.0
  %v18 = vadd.f32 %v16, %v17
  %v19 = vrot.slane %v18, 4
  %v20 = vadd.f32 %v18, %v19
  %v21 = vrot.slane %v20, 2
  %v22 = vadd.f32 %v20, %v21
  %v23 = vrot.slane %v22, 1
  %v24 = vadd.f32 %v22, %v23
  %v25 = vmul.f32 %v24, 0.0625
  %v26 = vsel %vm15, %v13, 0.0
  %v27 = vsel %vm15, %v14, 0.0
  %v28 = vadd.f32 %v26, %v27
  %v29 = vrot.slane %v28, 4
  %v30 = vadd.f32 %v28, %v29
  %v31 = vrot.slane %v30, 2
  %v32 = vadd.f32 %v30, %v31
  %v33 = vrot.slane %v32, 1
  %v34 = vadd.f32 %v32, %v33
  %v35 = vmul.f32 %v34, 0.0625
  %v36 = vsub.f32 %v11, %v25
  %v37 = vsub.f32 %v12, %v25
  %v38 = vsub.f32 %v13, %v35
  %v39 = vsub.f32 %v14, %v35
  %v40 = vmul.f32 %v36, %v36
  %v41 = vmul.f32 %v37, %v37
  %v42 = vsel %vm15, %v40, 0.0
  %v43 = vsel %vm15, %v41, 0.0
  %v44 = vadd.f32 %v42, %v43
  %v45 = vrot.slane %v44, 4
  %v46 = vadd.f32 %v44, %v45
  %v47 = vrot.slane %v46, 2
  %v48 = vadd.f32 %v46, %v47
  %v49 = vrot.slane %v48, 1
  %v50 = vadd.f32 %v48, %v49
  %v51 = vmul.f32 %v50, 0.06666667
  %v52 = vadd.f32 %v51, 1e-05
  %v53 = vrsqrt.pop %v52
  %v54 = vmul.f32 %v52, %v53
  %vm55 = vcmp.eq.f32.partialorder %v52, inf
  %v56 = vsel %vm55, %v52, %v54
  %vm57 = vcmp.eq.f32.partialorder %v52, 0.0
  %v58 = vand.u32 %v52, 2147483648
  %v59 = vsel %vm57, %v58, %v56
  %v60 = vmul.f32 %v38, %v38
  %v61 = vmul.f32 %v39, %v39
  %v62 = vsel %vm15, %v60, 0.0
  %v63 = vsel %vm15, %v61, 0.0
  %v64 = vadd.f32 %v62, %v63
  %v65 = vrot.slane %v64, 4
  %v66 = vadd.f32 %v64, %v65
  %v67 = vrot.slane %v66, 2
  %v68 = vadd.f32 %v66, %v67
  %v69 = vrot.slane %v68, 1
  %v70 = vadd.f32 %v68, %v69
  %v71 = vmul.f32 %v70, 0.06666667
  %v72 = vadd.f32 %v71, 1e-05
  %v73 = vrsqrt.pop %v72
  %v74 = vmul.f32 %v72, %v73
  %vm75 = vcmp.eq.f32.partialorder %v72, inf
  %v76 = vsel %vm75, %v72, %v74
  %vm77 = vcmp.eq.f32.partialorder %v72, 0.0
  %v78 = vand.u32 %v72, 2147483648
  %v79 = vsel %vm77, %v78, %v76
  %v80 = vsub.f32 %v25, %v35
  %v81 = vsub.f32 %v59, %v79
  %v82 = vmul.f32 %v80, %v80
  %v83 = vmul.f32 %v81, %v81
  %v84 = vadd.f32 %v82, %v83
  %vm85 = vcmask 253952
  %v86 = vsel %vm85, %v84, 0.0
  %87 = vadd.xlane.f32.xlu0 %v86
  %v88 = vpop.xlane.xlu0 %87
  %v89 = vrot.slane %v88, 4
  %v90 = vadd.f32 %v88, %v89
  %v91 = vrot.slane %v90, 2
  %v92 = vadd.f32 %v90, %v91
  %v93 = vrot.slane %v92, 1
  %v94 = vadd.f32 %v92, %v93
  %s95 = vtos %v94
  %v96 = vstv %s95
  %v97 = vadd.f32 %v96, 0.0
  %98 = vst [vmem:[%s2] sm:$0xff] %v97
  // Predicated region
  $region10: #{adain_loss.7} parent=0 // pred_check
    _
  $region11: #{adain_loss.7} parent=0 // pred_check_branch
    %100 = sbr.rel (0) target = $region13
  $region12: #{adain_loss.7} parent=0 // pred_region
    _
  $region13: #{adain_loss.7} parent=0 // pred_fallthru
    _
  // Predicated region
  $region14: #{adain_loss.7} parent=0 // pred_check
    _
  $region15: #{adain_loss.7} parent=0 // pred_check_branch
    %102 = sbr.rel (0) target = $region17
  $region16: #{adain_loss.7} parent=0 // pred_region
    _
  $region17: #{adain_loss.7} parent=0 // pred_fallthru
    _

// kernel: adain_loss.4
$region0: #{adain_loss.4}
  #allocation0 [shape = 'u32[]', space=smem, size = 0x4, offset = 0x4, fixed_abs, tag = 'smem constant byte address 0x4 - core index']
  #allocation1 [shape = 'u32[144,128]{1,0:T(1,128)}', space=vmem, size = 0x12000, scoped, tag = 'internal scratch']
  %s0 = inlined_call_operand.vmem [shape: f32[16,128], index: 0, kind: input, shape index: {}]
  %s1 = inlined_call_operand.vmem [shape: f32[16,128], index: 1, kind: input, shape index: {}]
  %s2 = inlined_call_operand.vmem [shape: f32[16,128], index: 2, kind: output, shape index: {}]
  %s3 = sld [smem:[#allocation0]]
  $region41: #{adain_loss.4} parent=0
    _
  %s5 = ssub.s32 1, %s3
  %s6 = scalar_select 0, %s5, %s3
  loop: start=0, step=1, limit=4
  $region2: #{adain_loss.4} parent=0 // loop_pre_header
    _
  $region3: #{adain_loss.4} parent=0 // loop_header
    %s8 = sphi 0, %s12
    %p9 = scmp.ge.s32.totalorder %s8, 4
    %s18 = sphi 0, %s20
    %s21 = sphi 0, %s18
    %s22 = sphi 0, %s21
    %s38 = sphi 0, %s22
    %s44 = sphi 0, %s46
    %s47 = sphi 0, %s44
    %s48 = sphi 0, %s47
    %s64 = sphi 0, %s48
    %s70 = sphi 0, %s72
    %s73 = sphi 0, %s70
    %s74 = sphi 0, %s73
    %s90 = sphi 0, %s74
  $region4: #{adain_loss.4} parent=0 // loop_header_branch
    %11 = sbr.rel (%p9) target = $region8
  $region5: #{adain_loss.4} parent=0 // loop_body
    %s13 = ssub.s32 %s8, 1
    %s14 = ssub.s32 %s8, 2
    %s15 = sadd.s32 %s8, 1
    %s16 = ssub.s32 %s8, %s15
    %p17 = scmp.eq.s32.totalorder %s16, 0
    %s19 = sadd.s32 %s18, 1
    %s20 = scalar_select %p17, %s18, %s19
    %p23 = pneg %p17
    %p24 = scmp.eq.s32.totalorder %s8, 1
    %p25 = por %p23, %p24
    %p26 = scmp.ne.s32.totalorder %s18, %s21
    %p27 = scmp.eq.s32.totalorder %s8, 0
    %p28 = por %p26, %p27
    %p29 = scmp.ne.s32.totalorder %s18, %s21
    %p30 = scmp.eq.s32.totalorder %s13, 1
    %p31 = por %p29, %p30
    %p32 = scmp.ne.s32.totalorder %s21, %s22
    %p33 = scmp.eq.s32.totalorder %s13, 0
    %p34 = por %p32, %p33
    %p35 = scmp.ne.s32.totalorder %s21, %s22
    %p36 = scmp.eq.s32.totalorder %s14, 1
    %p37 = por %p35, %p36
    %p39 = scmp.ne.s32.totalorder %s22, %s38
    %p40 = scmp.eq.s32.totalorder %s14, 0
    %p41 = por %p39, %p40
    %s42 = ssub.s32 %s8, %s15
    %p43 = scmp.eq.s32.totalorder %s42, 0
    %s45 = sadd.s32 %s44, 1
    %s46 = scalar_select %p43, %s44, %s45
    %p49 = pneg %p43
    %p50 = scmp.eq.s32.totalorder %s8, 1
    %p51 = por %p49, %p50
    %p52 = scmp.ne.s32.totalorder %s44, %s47
    %p53 = scmp.eq.s32.totalorder %s8, 0
    %p54 = por %p52, %p53
    %p55 = scmp.ne.s32.totalorder %s44, %s47
    %p56 = scmp.eq.s32.totalorder %s13, 1
    %p57 = por %p55, %p56
    %p58 = scmp.ne.s32.totalorder %s47, %s48
    %p59 = scmp.eq.s32.totalorder %s13, 0
    %p60 = por %p58, %p59
    %p61 = scmp.ne.s32.totalorder %s47, %s48
    %p62 = scmp.eq.s32.totalorder %s14, 1
    %p63 = por %p61, %p62
    %p65 = scmp.ne.s32.totalorder %s48, %s64
    %p66 = scmp.eq.s32.totalorder %s14, 0
    %p67 = por %p65, %p66
    %s68 = ssub.s32 %s8, %s15
    %p69 = scmp.eq.s32.totalorder %s68, 0
    %s71 = sadd.s32 %s70, 1
    %s72 = scalar_select %p69, %s70, %s71
    %p75 = pneg %p69
    %p76 = scmp.eq.s32.totalorder %s8, 1
    %p77 = por %p75, %p76
    %p78 = scmp.ne.s32.totalorder %s70, %s73
    %p79 = scmp.eq.s32.totalorder %s8, 0
    %p80 = por %p78, %p79
    %p81 = scmp.ne.s32.totalorder %s70, %s73
    %p82 = scmp.eq.s32.totalorder %s13, 1
    %p83 = por %p81, %p82
    %p84 = scmp.ne.s32.totalorder %s73, %s74
    %p85 = scmp.eq.s32.totalorder %s13, 0
    %p86 = por %p84, %p85
    %p87 = scmp.ne.s32.totalorder %s73, %s74
    %p88 = scmp.eq.s32.totalorder %s14, 1
    %p89 = por %p87, %p88
    %p91 = scmp.ne.s32.totalorder %s74, %s90
    %p92 = scmp.eq.s32.totalorder %s14, 0
    %p93 = por %p91, %p92
    %p94 = scmp.le.s32.totalorder 1, %s8
    %p95 = scmp.lt.s32.totalorder %s8, 3
    %p96 = pnand %p94, %p95
    %p97 = pneg %p96
    // Predicated region
    $region9: #{adain_loss.4} parent=5 // pred_check
      _
    $region10: #{adain_loss.4} parent=5 // pred_check_branch
      %99 = sbr.rel (%p96) target = $region12
    $region11: #{adain_loss.4} parent=5 // pred_region
      %s100 = ssub.s32 %s8, 1
    $region12: #{adain_loss.4} parent=5 // pred_fallthru
      _
    %p101 = scmp.lt.s32.totalorder %s8, 2
    // Predicated region
    $region13: #{adain_loss.4} parent=5 // pred_check
      %p102 = pneg %p101
    $region14: #{adain_loss.4} parent=5 // pred_check_branch
      %104 = sbr.rel (%p102) target = $region16
    $region15: #{adain_loss.4} parent=5 // pred_region
      // Predicated region
      $region17: #{adain_loss.4} parent=15 // pred_check
        %p105 = pneg %p28
      $region18: #{adain_loss.4} parent=15 // pred_check_branch
        %107 = sbr.rel (%p105) target = $region20
      $region19: #{adain_loss.4} parent=15 // pred_region
        %p108 = scmp.lt.s32.totalorder %s8, 1
        %s109 = scalar_select %p108, %s8, 1
        %s110 = smul.addr %s109, 8
        %s111 = scalar_lea.vmem %s0, %s110
      $region20: #{adain_loss.4} parent=15 // pred_fallthru
        _
      // Predicated region
      $region21: #{adain_loss.4} parent=15 // pred_check
        %p112 = pneg %p54
      $region22: #{adain_loss.4} parent=15 // pred_check_branch
        %114 = sbr.rel (%p112) target = $region24
      $region23: #{adain_loss.4} parent=15 // pred_region
        %p115 = scmp.lt.s32.totalorder %s8, 1
        %s116 = scalar_select %p115, %s8, 1
        %s117 = smul.addr %s116, 8
        %s118 = scalar_lea.vmem %s1, %s117
      $region24: #{adain_loss.4} parent=15 // pred_fallthru
        _
    $region16: #{adain_loss.4} parent=5 // pred_fallthru
      _
    %p119 = scmp.le.s32.totalorder 1, %s8
    %p120 = scmp.lt.s32.totalorder %s8, 3
    %p121 = pnand %p119, %p120
    %p122 = pneg %p121
    // Predicated region
    $region25: #{adain_loss.4} parent=5 // pred_check
      _
    $region26: #{adain_loss.4} parent=5 // pred_check_branch
      %124 = sbr.rel (%p121) target = $region28
    $region27: #{adain_loss.4} parent=5 // pred_region
      %s125 = ssub.s32 %s8, 1
      %p126 = scmp.lt.s32.totalorder %s13, 1
      %s127 = scalar_select %p126, %s13, 1
      %s128 = smul.addr %s127, 8
      %s129 = scalar_lea.vmem %s0, %s128
      %p130 = pneg %p34
      %p131 = pneg %p31
      %p132 = scmp.lt.s32.totalorder %s13, 1
      %s133 = scalar_select %p132, %s13, 1
      %s134 = smul.addr %s133, 8
      %s135 = scalar_lea.vmem %s1, %s134
      %p136 = pneg %p60
      %p137 = pneg %p57
      %p138 = pneg %p86
      %p139 = pneg %p83
      %p140 = scmp.lt.s32.totalorder %s13, 1
      %s141 = scalar_select %p140, %s13, 1
      %s142 = smul.addr %s141, 8
      %s143 = scalar_lea.vmem %s2, %s142
      %p144 = scmp.lt.s32.totalorder %s13, 1
      %s145 = scalar_select %p144, %s13, 1
      %s146 = smul.addr %s145, 8
      %s147 = scalar_lea.vmem %s0, %s146
      %p148 = scmp.lt.s32.totalorder %s13, 1
      %s149 = scalar_select %p148, %s13, 1
      %s150 = smul.addr %s149, 8
      %s151 = scalar_lea.vmem %s1, %s150
      %p152 = scmp.lt.s32.totalorder %s13, 1
      %s153 = scalar_select %p152, %s13, 1
      %s154 = smul.addr %s153, 8
      %s155 = scalar_lea.vmem %s2, %s154
      %v156 = vld [vmem:[%s147] sm:$0xff]
      %v157 = vld [vmem:[%s151] sm:$0xff]
      %v158 = vsub.f32 %v156, %v157
      %v159 = vmul.f32 %v158, %v158
      %v160 = vadd.f32 %v159, 0.0
      %v161 = vadd.f32 %v160, 0.0
      %162 = vst [vmem:[%s155] sm:$0xff] %v161
      %p163 = scmp.lt.s32.totalorder %s13, 1
      %s164 = scalar_select %p163, %s13, 1
      %s165 = smul.addr %s164, 8
      %s166 = scalar_lea.vmem %s2, %s165
      // Predicated region
      $region29: #{adain_loss.4} parent=27 // pred_check
        %p167 = pneg %p83
      $region30: #{adain_loss.4} parent=27 // pred_check_branch
        %169 = sbr.rel (%p167) target = $region32
      $region31: #{adain_loss.4} parent=27 // pred_region
        _
      $region32: #{adain_loss.4} parent=27 // pred_fallthru
        _
    $region28: #{adain_loss.4} parent=5 // pred_fallthru
      _
    %p170 = scmp.le.s32.totalorder 2, %s8
    // Predicated region
    $region33: #{adain_loss.4} parent=5 // pred_check
      %p171 = pneg %p170
    $region34: #{adain_loss.4} parent=5 // pred_check_branch
      %173 = sbr.rel (%p171) target = $region36
    $region35: #{adain_loss.4} parent=5 // pred_region
      %s174 = ssub.s32 %s8, 2
      // Predicated region
      $region37: #{adain_loss.4} parent=35 // pred_check
        %p175 = pneg %p89
      $region38: #{adain_loss.4} parent=35 // pred_check_branch
        %177 = sbr.rel (%p175) target = $region40
      $region39: #{adain_loss.4} parent=35 // pred_region
        %p178 = scmp.lt.s32.totalorder %s14, 1
        %s179 = scalar_select %p178, %s14, 1
        %s180 = smul.addr %s179, 8
        %s181 = scalar_lea.vmem %s2, %s180
      $region40: #{adain_loss.4} parent=35 // pred_fallthru
        _
    $region36: #{adain_loss.4} parent=5 // pred_fallthru
      _
  $region6: #{adain_loss.4} parent=0 // loop_footer
    %s12 = sadd.s32 1, %s8
  $region7: #{adain_loss.4} parent=0 // loop_footer_branch
    %7 = sbr.rel target = $region3
  $region8: #{adain_loss.4} parent=0 // loop_exit
    _

</llo_original>
